<compile_context>
chip_gen: v6e
topology: v6e:2x2x1
jax: 0.10.0
libtpu: 0.0.40
codegen_flags: <defaults>
</compile_context>

<pallas_src>
import functools

import jax
import jax.numpy as jnp
from jax.experimental import pallas as pl
from jax.experimental.pallas import tpu as pltpu

LANE = 128     # lane width of a vreg (fast axis)
SUBLANE = 8    # sublane count of a vreg (slow axis)


def _round_up(x: int, m: int) -> int:
    return ((x + m - 1) // m) * m


# ---------------------------------------------------------------------------
# Fused kernel: whole MLP in one pallas_call
#   x_ref: (B_pad, D)        padded input activations
#   w_ref: (L, D, D)         stacked, transposed (in, out), zero-padded weights
#   b_ref: (L, 1, D)         stacked, zero-padded biases
#   o_ref: (B_pad, D)        padded output of the last (linear-only) layer
# ---------------------------------------------------------------------------
def _fused_mlp_kernel(x_ref, w_ref, b_ref, o_ref, *, num_layers: int):
    h = x_ref[...]
    # Static Python loop -> fully unrolled; activations stay in vregs/VMEM.
    for l in range(num_layers):
        y = jnp.dot(h, w_ref[l], preferred_element_type=jnp.float32)
        y = y + b_ref[l]                      # (1, D) broadcast over batch
        if l < num_layers - 1:                # hidden layers: tanh activation
            y = jnp.tanh(y)
        h = y
    o_ref[...] = h.astype(o_ref.dtype)


# ---------------------------------------------------------------------------
# Parameter packing: transpose + zero-pad + stack (done once, outside forward)
# ---------------------------------------------------------------------------
def build_fused_params(params):
    """params: list of (w, b) in PyTorch layout w=(out,in), b=(out,).

    Returns (w_stack, b_stack) with
      w_stack: (L, D_pad, D_pad)  float32, (in, out) layout, zero-padded
      b_stack: (L, 1, D_pad)      float32, zero-padded
    """
    dims = [params[0][0].shape[1]] + [w.shape[0] for (w, _) in params]
    d_pad = _round_up(max(dims), LANE)
    L = len(params)
    w_stack = jnp.zeros((L, d_pad, d_pad), dtype=jnp.float32)
    b_stack = jnp.zeros((L, 1, d_pad), dtype=jnp.float32)
    for l, (w, b) in enumerate(params):
        dout, din = w.shape
        w_stack = w_stack.at[l, :din, :dout].set(w.T.astype(jnp.float32))
        b_stack = b_stack.at[l, 0, :dout].set(b.astype(jnp.float32))
    return w_stack, b_stack


# ---------------------------------------------------------------------------
# Jitted forward: pad input, single pallas_call, slice back
# ---------------------------------------------------------------------------
@functools.partial(jax.jit, static_argnames=("out_features",))
def fused_linears_forward(x, w_stack, b_stack, out_features: int):
    B, in_dim = x.shape
    L, d_pad, _ = w_stack.shape
    b_pad = _round_up(B, SUBLANE)

    x_p = jnp.zeros((b_pad, d_pad), dtype=jnp.float32)
    x_p = x_p.at[:B, :in_dim].set(x.astype(jnp.float32))

    out_p = pl.pallas_call(
        functools.partial(_fused_mlp_kernel, num_layers=L),
        out_shape=jax.ShapeDtypeStruct((b_pad, d_pad), jnp.float32),
        in_specs=[
            pl.BlockSpec((b_pad, d_pad), lambda: (0, 0)),
            pl.BlockSpec((L, d_pad, d_pad), lambda: (0, 0, 0)),
            pl.BlockSpec((L, 1, d_pad), lambda: (0, 0, 0)),
        ],
        out_specs=pl.BlockSpec((b_pad, d_pad), lambda: (0, 0)),
        compiler_params=pltpu.CompilerParams(
            vmem_limit_bytes=32 * 1024 * 1024),
    )(x_p, w_stack, b_stack)

    return out_p[:B, :out_features]


# ---------------------------------------------------------------------------
# Parameter construction (deterministic, mirrors the PyTorch module)
# ---------------------------------------------------------------------------
def _orthogonal(key, out_dim, in_dim):
    """Deterministic orthogonal init like torch.nn.init.orthogonal_."""
    rows, cols = max(out_dim, in_dim), min(out_dim, in_dim)
    a = jax.random.normal(key, (rows, cols), dtype=jnp.float32)
    q, r = jnp.linalg.qr(a)
    q = q * jnp.sign(jnp.diagonal(r))
    if out_dim < in_dim:
        q = q.T
    return q[:out_dim, :in_dim]


def init_linears_params(key, in_features, out_features, hiddens, bias=True):
    in_dims = [in_features] + hiddens[:-1]
    out_dims = list(hiddens)
    in_dims.append(hiddens[-1])       # output_linear
    out_dims.append(out_features)

    params = []
    for i, (din, dout) in enumerate(zip(in_dims, out_dims)):
        kw, kb = jax.random.split(jax.random.fold_in(key, i))
        w = _orthogonal(kw, dout, din)            # PyTorch layout (out, in)
        if bias:
            bound = 1.0 / jnp.sqrt(float(din))    # default nn.Linear bias init
            b = jax.random.uniform(kb, (dout,), minval=-bound, maxval=bound,
                                   dtype=jnp.float32)
        else:
            b = jnp.zeros((dout,), dtype=jnp.float32)
        params.append((w, b))
    return params


def linears_reference(params, x):
    """Pure-JAX reference matching Linears.forward."""
    for (w, b) in params[:-1]:
        x = jnp.tanh(x @ w.T + b)
    w, b = params[-1]
    return x @ w.T + b


if __name__ == "__main__":
    key = jax.random.PRNGKey(0)

    batch = 8
    in_features = 32
    hiddens = [64, 48]
    out_features = 16

    kx, kp = jax.random.split(key)
    x = jax.random.normal(kx, (batch, in_features), dtype=jnp.float32)
    params = init_linears_params(kp, in_features, out_features, hiddens, bias=True)

    # Pack once (transpose + pad + stack), then run the single fused kernel.
    w_stack, b_stack = build_fused_params(params)
    out = fused_linears_forward(x, w_stack, b_stack, out_features)
    out = jax.block_until_ready(out)

    ref = linears_reference(params, x)
    assert out.shape == (batch, out_features), out.shape
    assert jnp.allclose(out, ref, atol=1e-4, rtol=1e-4), "mismatch vs reference"

    print("KERNEL_OK")
</pallas_src>

<mosaic_0001>
module attributes {stable_mosaic.version = 11 : i64} {
  func.func @_fused_mlp_kernel(%arg0: memref<8x128xf32, #tpu.memory_space<vmem>>, %arg1: memref<3x128x128xf32, #tpu.memory_space<vmem>>, %arg2: memref<3x1x128xf32, #tpu.memory_space<vmem>>, %arg3: memref<8x128xf32, #tpu.memory_space<vmem>>) attributes {dimension_semantics = [], scalar_prefetch = 0 : i64, scratch_operands = 0 : i64, tpu.core_type = #tpu.core_type<tc>} {
    %c0 = arith.constant 0 : index
    %c0_0 = arith.constant 0 : index
    %0 = vector.load %arg0[%c0, %c0_0] : memref<8x128xf32, #tpu.memory_space<vmem>>, vector<8x128xf32>
    %c0_1 = arith.constant 0 : index
    %c0_2 = arith.constant 0 : index
    %c0_3 = arith.constant 0 : index
    %1 = vector.load %arg1[%c0_1, %c0_2, %c0_3] : memref<3x128x128xf32, #tpu.memory_space<vmem>>, vector<1x128x128xf32>
    %2 = vector.shape_cast %1 : vector<1x128x128xf32> to vector<128x128xf32>
    %cst = arith.constant dense<0.000000e+00> : vector<8x128xf32>
    %3 = tpu.matmul %0, %2, %cst {dimension_numbers = #tpu.dot_dimension_numbers<[1], [0], [0], [1], [0, 0, 1, 1], [], []>} : vector<8x128xf32>, vector<128x128xf32>, vector<8x128xf32> -> vector<8x128xf32>
    %c0_4 = arith.constant 0 : index
    %c0_5 = arith.constant 0 : index
    %c0_6 = arith.constant 0 : index
    %4 = vector.load %arg2[%c0_4, %c0_5, %c0_6] : memref<3x1x128xf32, #tpu.memory_space<vmem>>, vector<1x1x128xf32>
    %5 = vector.shape_cast %4 : vector<1x1x128xf32> to vector<1x128xf32>
    %6 = vector.broadcast %5 : vector<1x128xf32> to vector<8x128xf32>
    %7 = arith.addf %3, %6 : vector<8x128xf32>
    %8 = math.tanh %7 : vector<8x128xf32>
    %c1 = arith.constant 1 : index
    %c0_7 = arith.constant 0 : index
    %c0_8 = arith.constant 0 : index
    %9 = vector.load %arg1[%c1, %c0_7, %c0_8] : memref<3x128x128xf32, #tpu.memory_space<vmem>>, vector<1x128x128xf32>
    %10 = vector.shape_cast %9 : vector<1x128x128xf32> to vector<128x128xf32>
    %cst_9 = arith.constant dense<0.000000e+00> : vector<8x128xf32>
    %11 = tpu.matmul %8, %10, %cst_9 {dimension_numbers = #tpu.dot_dimension_numbers<[1], [0], [0], [1], [0, 0, 1, 1], [], []>} : vector<8x128xf32>, vector<128x128xf32>, vector<8x128xf32> -> vector<8x128xf32>
    %c1_10 = arith.constant 1 : index
    %c0_11 = arith.constant 0 : index
    %c0_12 = arith.constant 0 : index
    %12 = vector.load %arg2[%c1_10, %c0_11, %c0_12] : memref<3x1x128xf32, #tpu.memory_space<vmem>>, vector<1x1x128xf32>
    %13 = vector.shape_cast %12 : vector<1x1x128xf32> to vector<1x128xf32>
    %14 = vector.broadcast %13 : vector<1x128xf32> to vector<8x128xf32>
    %15 = arith.addf %11, %14 : vector<8x128xf32>
    %16 = math.tanh %15 : vector<8x128xf32>
    %c2 = arith.constant 2 : index
    %c0_13 = arith.constant 0 : index
    %c0_14 = arith.constant 0 : index
    %17 = vector.load %arg1[%c2, %c0_13, %c0_14] : memref<3x128x128xf32, #tpu.memory_space<vmem>>, vector<1x128x128xf32>
    %18 = vector.shape_cast %17 : vector<1x128x128xf32> to vector<128x128xf32>
    %cst_15 = arith.constant dense<0.000000e+00> : vector<8x128xf32>
    %19 = tpu.matmul %16, %18, %cst_15 {dimension_numbers = #tpu.dot_dimension_numbers<[1], [0], [0], [1], [0, 0, 1, 1], [], []>} : vector<8x128xf32>, vector<128x128xf32>, vector<8x128xf32> -> vector<8x128xf32>
    %c2_16 = arith.constant 2 : index
    %c0_17 = arith.constant 0 : index
    %c0_18 = arith.constant 0 : index
    %20 = vector.load %arg2[%c2_16, %c0_17, %c0_18] : memref<3x1x128xf32, #tpu.memory_space<vmem>>, vector<1x1x128xf32>
    %21 = vector.shape_cast %20 : vector<1x1x128xf32> to vector<1x128xf32>
    %22 = vector.broadcast %21 : vector<1x128xf32> to vector<8x128xf32>
    %23 = arith.addf %19, %22 : vector<8x128xf32>
    %c0_19 = arith.constant 0 : index
    %c0_20 = arith.constant 0 : index
    %24 = vector.load %arg3[%c0_19, %c0_20] : memref<8x128xf32, #tpu.memory_space<vmem>>, vector<8x128xf32>
    tpu.vector_store %arg3[%c0_19, %c0_20], %23 {strides = array<i32>} : memref<8x128xf32, #tpu.memory_space<vmem>>, vector<8x128xf32>,
    return
  }
}

</mosaic_0001>

<llo_original>
// kernel: fused_linears_forward.1
$region0: #{fused_linears_forward.1}
  #allocation0 [shape = 'u32[]', space=smem, size = 0x4, offset = 0x4, fixed_abs, tag = 'smem constant byte address 0x4 - core index']
  #allocation1 [shape = 'u32[144,128]{1,0:T(1,128)}', space=vmem, size = 0x12000, scoped, tag = 'internal scratch']
  %s0 = inlined_call_operand.vmem [shape: f32[8,128], index: 0, kind: input, shape index: {}]
  %s1 = inlined_call_operand.hbm [shape: f32[3,128,128], index: 1, kind: input, shape index: {}]
  %s2 = inlined_call_operand.vmem [shape: f32[3,1,128], index: 2, kind: input, shape index: {}]
  %s3 = inlined_call_operand.hbm [shape: f32[8,128], index: 3, kind: output, shape index: {}]
  %s4 = sld [smem:[#allocation0]]
  $region26: #{fused_linears_forward.1} parent=0
    _
  %s6 = ssub.s32 1, %s4
  %s7 = scalar_select 0, %s6, %s4
  $region1: #{fused_linears_forward.1} parent=0
    #allocation2 [shape = 'u8[196608]{0}', space=vmem, size = 0x30000, scoped, tag = 'input window, operand 1, single buffered']
    #allocation3 [shape = 's32[1]{0}', space=sflag, size = 0x4, scoped, tag = 'scoped memory for fused_linears_forward.1']
    #allocation4 [shape = 's32[1]{0}', space=sflag, size = 0x4, scoped, tag = 'scoped memory for fused_linears_forward.1']
    #allocation5 [shape = 'u8[4096]{0}', space=vmem, size = 0x1000, scoped, tag = 'output window, operand 0, single buffered']
    %8 = vsyncpa [#allocation3], 0
    %9 = vsyncpa [#allocation4], 0
    // Predicated region
    $region2: #{fused_linears_forward.1} parent=1 // pred_check
      _
    $region3: #{fused_linears_forward.1} parent=1 // pred_check_branch
      %11 = sbr.rel (0) target = $region5
    $region4: #{fused_linears_forward.1} parent=1 // pred_region
      _
    $region5: #{fused_linears_forward.1} parent=1 // pred_fallthru
      _
    // Predicated region
    $region6: #{fused_linears_forward.1} parent=1 // pred_check
      _
    $region7: #{fused_linears_forward.1} parent=1 // pred_check_branch
      %13 = sbr.rel (0) target = $region9
    $region8: #{fused_linears_forward.1} parent=1 // pred_region
      %s15 = ssub.s32 6144, 6144
      %16 = vsyncadd [#allocation3], %s15
      %s17 = sshll.u32 [#allocation2], 4
      %s18 = int_to_ptr.vmem [resolvable:$true] %s17
      %23 = dma.hbm_to_vmem [thread:$0]  %s1, 6144, %s18, [#allocation3], 128, 128, 8
    $region9: #{fused_linears_forward.1} parent=1 // pred_fallthru
      _
    // Predicated region
    $region10: #{fused_linears_forward.1} parent=1 // pred_check
      _
    $region11: #{fused_linears_forward.1} parent=1 // pred_check_branch
      %25 = sbr.rel (0) target = $region13
    $region12: #{fused_linears_forward.1} parent=1 // pred_region
      _
    $region13: #{fused_linears_forward.1} parent=1 // pred_fallthru
      _
    // Predicated region
    $region14: #{fused_linears_forward.1} parent=1 // pred_check
      _
    $region15: #{fused_linears_forward.1} parent=1 // pred_check_branch
      %27 = sbr.rel (0) target = $region17
    $region16: #{fused_linears_forward.1} parent=1 // pred_region
      %28 = dma.done [#allocation3], 6144
    $region17: #{fused_linears_forward.1} parent=1 // pred_fallthru
      _
    %v29 = vld [vmem:[%s0] sm:$0xff]
    %v30 = vld [vmem:[#allocation2] sm:$0xff]
    %v31 = vld [vmem:[#allocation2 + $0x8] sm:$0xff]
    %v32 = vld [vmem:[#allocation2 + $0x10] sm:$0xff]
    %v33 = vld [vmem:[#allocation2 + $0x18] sm:$0xff]
    %v34 = vld [vmem:[#allocation2 + $0x20] sm:$0xff]
    %v35 = vld [vmem:[#allocation2 + $0x28] sm:$0xff]
    %v36 = vld [vmem:[#allocation2 + $0x30] sm:$0xff]
    %v37 = vld [vmem:[#allocation2 + $0x38] sm:$0xff]
    %v38 = vld [vmem:[#allocation2 + $0x40] sm:$0xff]
    %v39 = vld [vmem:[#allocation2 + $0x48] sm:$0xff]
    %v40 = vld [vmem:[#allocation2 + $0x50] sm:$0xff]
    %v41 = vld [vmem:[#allocation2 + $0x58] sm:$0xff]
    %v42 = vld [vmem:[#allocation2 + $0x60] sm:$0xff]
    %v43 = vld [vmem:[#allocation2 + $0x68] sm:$0xff]
    %v44 = vld [vmem:[#allocation2 + $0x70] sm:$0xff]
    %v45 = vld [vmem:[#allocation2 + $0x78] sm:$0xff]
    %v46 = vld [vmem:[%s2] sm:$0x1]
    %v48 = vlaneseq
    %v49 = vshrl.u32 %v48, 7
    %v50 = vsub.s32 0, %v49
    %v51 = vrot.slane %v46, %v50
    %53 = vmatprep.subr.mxu0 0.0
    %54 = vmatpush1.msra.mxu0 %v45
    %55 = vmatprep.subr.mxu0 0.0
    %56 = vmatpush1.msra.mxu0 %v44
    %57 = vmatprep.subr.mxu0 0.0
    %58 = vmatpush1.msra.mxu0 %v43
    %59 = vmatprep.subr.mxu0 0.0
    %60 = vmatpush1.msra.mxu0 %v42
    %61 = vmatprep.subr.mxu0 0.0
    %62 = vmatpush1.msra.mxu0 %v41
    %63 = vmatprep.subr.mxu0 0.0
    %64 = vmatpush1.msra.mxu0 %v40
    %65 = vmatprep.subr.mxu0 0.0
    %66 = vmatpush1.msra.mxu0 %v39
    %67 = vmatprep.subr.mxu0 0.0
    %68 = vmatpush1.msra.mxu0 %v38
    %69 = vmatprep.subr.mxu0 0.0
    %70 = vmatpush1.msra.mxu0 %v37
    %71 = vmatprep.subr.mxu0 0.0
    %72 = vmatpush1.msra.mxu0 %v36
    %73 = vmatprep.subr.mxu0 0.0
    %74 = vmatpush1.msra.mxu0 %v35
    %75 = vmatprep.subr.mxu0 0.0
    %76 = vmatpush1.msra.mxu0 %v34
    %77 = vmatprep.subr.mxu0 0.0
    %78 = vmatpush1.msra.mxu0 %v33
    %79 = vmatprep.subr.mxu0 0.0
    %80 = vmatpush1.msra.mxu0 %v32
    %81 = vmatprep.subr.mxu0 0.0
    %82 = vmatpush1.msra.mxu0 %v31
    %83 = vmatprep.subr.mxu0 0.0
    %84 = vmatpush1.msra.mxu0 %v30
    %85 = vmatprep.subr.mxu0 0.0
    %86 = vmatpush2.msra.mxu0 0.0
    %87 = vmatprep.subr.mxu0 0.0
    %88 = vmatpush2.msra.mxu0 0.0
    %89 = vmatprep.subr.mxu0 0.0
    %90 = vmatpush2.msra.mxu0 0.0
    %91 = vmatprep.subr.mxu0 0.0
    %92 = vmatpush2.msra.mxu0 0.0
    %93 = vmatprep.subr.mxu0 0.0
    %94 = vmatpush2.msra.mxu0 0.0
    %95 = vmatprep.subr.mxu0 0.0
    %96 = vmatpush2.msra.mxu0 0.0
    %97 = vmatprep.subr.mxu0 0.0
    %98 = vmatpush2.msra.mxu0 0.0
    %99 = vmatprep.subr.mxu0 0.0
    %100 = vmatpush2.msra.mxu0 0.0
    %101 = vmatprep.subr.mxu0 0.0
    %102 = vmatpush2.msra.mxu0 0.0
    %103 = vmatprep.subr.mxu0 0.0
    %104 = vmatpush2.msra.mxu0 0.0
    %105 = vmatprep.subr.mxu0 0.0
    %106 = vmatpush2.msra.mxu0 0.0
    %107 = vmatprep.subr.mxu0 0.0
    %108 = vmatpush2.msra.mxu0 0.0
    %109 = vmatprep.subr.mxu0 0.0
    %110 = vmatpush2.msra.mxu0 0.0
    %111 = vmatprep.subr.mxu0 0.0
    %112 = vmatpush2.msra.mxu0 0.0
    %113 = vmatprep.subr.mxu0 0.0
    %114 = vmatpush2.msra.mxu0 0.0
    %115 = vmatprep.subr.mxu0 0.0
    %116 = vmatpush2.msra.mxu0 0.0
    %117 = vmatprep.mubr.f32.mxu0 0.0
    %118 = vmatmul.mubr.f32.gmra.mxu0 %v29
    %v119 = vpop.f32.mrf.mxu0
    %v120 = vadd.f32 %v51, %v119
    %v121 = vpop.f32.mrf.mxu0
    %122 = vdwg.mxu0
    %v123 = vtanh.pop %v120
    %s124 = scalar_lea.vmem [#allocation2], 128
    %v125 = vld [vmem:[%s124] sm:$0xff]
    %v126 = vld [vmem:[%s124 + $0x8] sm:$0xff]
    %v127 = vld [vmem:[%s124 + $0x10] sm:$0xff]
    %v128 = vld [vmem:[%s124 + $0x18] sm:$0xff]
    %v129 = vld [vmem:[%s124 + $0x20] sm:$0xff]
    %v130 = vld [vmem:[%s124 + $0x28] sm:$0xff]
    %v131 = vld [vmem:[%s124 + $0x30] sm:$0xff]
    %v132 = vld [vmem:[%s124 + $0x38] sm:$0xff]
    %v133 = vld [vmem:[%s124 + $0x40] sm:$0xff]
    %v134 = vld [vmem:[%s124 + $0x48] sm:$0xff]
    %v135 = vld [vmem:[%s124 + $0x50] sm:$0xff]
    %v136 = vld [vmem:[%s124 + $0x58] sm:$0xff]
    %v137 = vld [vmem:[%s124 + $0x60] sm:$0xff]
    %v138 = vld [vmem:[%s124 + $0x68] sm:$0xff]
    %v139 = vld [vmem:[%s124 + $0x70] sm:$0xff]
    %v140 = vld [vmem:[%s124 + $0x78] sm:$0xff]
    %s141 = scalar_lea.vmem %s2, 1
    %v142 = vld [vmem:[%s141] sm:$0x1]
    %v144 = vlaneseq
    %v145 = vshrl.u32 %v144, 7
    %v146 = vsub.s32 0, %v145
    %v147 = vrot.slane %v142, %v146
    %149 = vmatprep.subr.mxu0 0.0
    %150 = vmatpush1.msra.mxu0 %v140
    %151 = vmatprep.subr.mxu0 0.0
    %152 = vmatpush1.msra.mxu0 %v139
    %153 = vmatprep.subr.mxu0 0.0
    %154 = vmatpush1.msra.mxu0 %v138
    %155 = vmatprep.subr.mxu0 0.0
    %156 = vmatpush1.msra.mxu0 %v137
    %157 = vmatprep.subr.mxu0 0.0
    %158 = vmatpush1.msra.mxu0 %v136
    %159 = vmatprep.subr.mxu0 0.0
    %160 = vmatpush1.msra.mxu0 %v135
    %161 = vmatprep.subr.mxu0 0.0
    %162 = vmatpush1.msra.mxu0 %v134
    %163 = vmatprep.subr.mxu0 0.0
    %164 = vmatpush1.msra.mxu0 %v133
    %165 = vmatprep.subr.mxu0 0.0
    %166 = vmatpush1.msra.mxu0 %v132
    %167 = vmatprep.subr.mxu0 0.0
    %168 = vmatpush1.msra.mxu0 %v131
    %169 = vmatprep.subr.mxu0 0.0
    %170 = vmatpush1.msra.mxu0 %v130
    %171 = vmatprep.subr.mxu0 0.0
    %172 = vmatpush1.msra.mxu0 %v129
    %173 = vmatprep.subr.mxu0 0.0
    %174 = vmatpush1.msra.mxu0 %v128
    %175 = vmatprep.subr.mxu0 0.0
    %176 = vmatpush1.msra.mxu0 %v127
    %177 = vmatprep.subr.mxu0 0.0
    %178 = vmatpush1.msra.mxu0 %v126
    %179 = vmatprep.subr.mxu0 0.0
    %180 = vmatpush1.msra.mxu0 %v125
    %181 = vmatprep.subr.mxu0 0.0
    %182 = vmatpush2.msra.mxu0 0.0
    %183 = vmatprep.subr.mxu0 0.0
    %184 = vmatpush2.msra.mxu0 0.0
    %185 = vmatprep.subr.mxu0 0.0
    %186 = vmatpush2.msra.mxu0 0.0
    %187 = vmatprep.subr.mxu0 0.0
    %188 = vmatpush2.msra.mxu0 0.0
    %189 = vmatprep.subr.mxu0 0.0
    %190 = vmatpush2.msra.mxu0 0.0
    %191 = vmatprep.subr.mxu0 0.0
    %192 = vmatpush2.msra.mxu0 0.0
    %193 = vmatprep.subr.mxu0 0.0
    %194 = vmatpush2.msra.mxu0 0.0
    %195 = vmatprep.subr.mxu0 0.0
    %196 = vmatpush2.msra.mxu0 0.0
    %197 = vmatprep.subr.mxu0 0.0
    %198 = vmatpush2.msra.mxu0 0.0
    %199 = vmatprep.subr.mxu0 0.0
    %200 = vmatpush2.msra.mxu0 0.0
    %201 = vmatprep.subr.mxu0 0.0
    %202 = vmatpush2.msra.mxu0 0.0
    %203 = vmatprep.subr.mxu0 0.0
    %204 = vmatpush2.msra.mxu0 0.0
    %205 = vmatprep.subr.mxu0 0.0
    %206 = vmatpush2.msra.mxu0 0.0
    %207 = vmatprep.subr.mxu0 0.0
    %208 = vmatpush2.msra.mxu0 0.0
    %209 = vmatprep.subr.mxu0 0.0
    %210 = vmatpush2.msra.mxu0 0.0
    %211 = vmatprep.subr.mxu0 0.0
    %212 = vmatpush2.msra.mxu0 0.0
    %213 = vmatprep.mubr.f32.mxu0 0.0
    %214 = vmatmul.mubr.f32.gmra.mxu0 %v123
    %v215 = vpop.f32.mrf.mxu0
    %v216 = vadd.f32 %v147, %v215
    %v217 = vpop.f32.mrf.mxu0
    %218 = vdwg.mxu0
    %v219 = vtanh.pop %v216
    %s220 = scalar_lea.vmem [#allocation2], 256
    %v221 = vld [vmem:[%s220] sm:$0xff]
    %v222 = vld [vmem:[%s220 + $0x8] sm:$0xff]
    %v223 = vld [vmem:[%s220 + $0x10] sm:$0xff]
    %v224 = vld [vmem:[%s220 + $0x18] sm:$0xff]
    %v225 = vld [vmem:[%s220 + $0x20] sm:$0xff]
    %v226 = vld [vmem:[%s220 + $0x28] sm:$0xff]
    %v227 = vld [vmem:[%s220 + $0x30] sm:$0xff]
    %v228 = vld [vmem:[%s220 + $0x38] sm:$0xff]
    %v229 = vld [vmem:[%s220 + $0x40] sm:$0xff]
    %v230 = vld [vmem:[%s220 + $0x48] sm:$0xff]
    %v231 = vld [vmem:[%s220 + $0x50] sm:$0xff]
    %v232 = vld [vmem:[%s220 + $0x58] sm:$0xff]
    %v233 = vld [vmem:[%s220 + $0x60] sm:$0xff]
    %v234 = vld [vmem:[%s220 + $0x68] sm:$0xff]
    %v235 = vld [vmem:[%s220 + $0x70] sm:$0xff]
    %v236 = vld [vmem:[%s220 + $0x78] sm:$0xff]
    %s237 = scalar_lea.vmem %s2, 2
    %v238 = vld [vmem:[%s237] sm:$0x1]
    %v240 = vlaneseq
    %v241 = vshrl.u32 %v240, 7
    %v242 = vsub.s32 0, %v241
    %v243 = vrot.slane %v238, %v242
    %245 = vmatprep.subr.mxu0 0.0
    %246 = vmatpush1.msra.mxu0 %v236
    %247 = vmatprep.subr.mxu0 0.0
    %248 = vmatpush1.msra.mxu0 %v235
    %249 = vmatprep.subr.mxu0 0.0
    %250 = vmatpush1.msra.mxu0 %v234
    %251 = vmatprep.subr.mxu0 0.0
    %252 = vmatpush1.msra.mxu0 %v233
    %253 = vmatprep.subr.mxu0 0.0
    %254 = vmatpush1.msra.mxu0 %v232
    %255 = vmatprep.subr.mxu0 0.0
    %256 = vmatpush1.msra.mxu0 %v231
    %257 = vmatprep.subr.mxu0 0.0
    %258 = vmatpush1.msra.mxu0 %v230
    %259 = vmatprep.subr.mxu0 0.0
    %260 = vmatpush1.msra.mxu0 %v229
    %261 = vmatprep.subr.mxu0 0.0
    %262 = vmatpush1.msra.mxu0 %v228
    %263 = vmatprep.subr.mxu0 0.0
    %264 = vmatpush1.msra.mxu0 %v227
    %265 = vmatprep.subr.mxu0 0.0
    %266 = vmatpush1.msra.mxu0 %v226
    %267 = vmatprep.subr.mxu0 0.0
    %268 = vmatpush1.msra.mxu0 %v225
    %269 = vmatprep.subr.mxu0 0.0
    %270 = vmatpush1.msra.mxu0 %v224
    %271 = vmatprep.subr.mxu0 0.0
    %272 = vmatpush1.msra.mxu0 %v223
    %273 = vmatprep.subr.mxu0 0.0
    %274 = vmatpush1.msra.mxu0 %v222
    %275 = vmatprep.subr.mxu0 0.0
    %276 = vmatpush1.msra.mxu0 %v221
    %277 = vmatprep.subr.mxu0 0.0
    %278 = vmatpush2.msra.mxu0 0.0
    %279 = vmatprep.subr.mxu0 0.0
    %280 = vmatpush2.msra.mxu0 0.0
    %281 = vmatprep.subr.mxu0 0.0
    %282 = vmatpush2.msra.mxu0 0.0
    %283 = vmatprep.subr.mxu0 0.0
    %284 = vmatpush2.msra.mxu0 0.0
    %285 = vmatprep.subr.mxu0 0.0
    %286 = vmatpush2.msra.mxu0 0.0
    %287 = vmatprep.subr.mxu0 0.0
    %288 = vmatpush2.msra.mxu0 0.0
    %289 = vmatprep.subr.mxu0 0.0
    %290 = vmatpush2.msra.mxu0 0.0
    %291 = vmatprep.subr.mxu0 0.0
    %292 = vmatpush2.msra.mxu0 0.0
    %293 = vmatprep.subr.mxu0 0.0
    %294 = vmatpush2.msra.mxu0 0.0
    %295 = vmatprep.subr.mxu0 0.0
    %296 = vmatpush2.msra.mxu0 0.0
    %297 = vmatprep.subr.mxu0 0.0
    %298 = vmatpush2.msra.mxu0 0.0
    %299 = vmatprep.subr.mxu0 0.0
    %300 = vmatpush2.msra.mxu0 0.0
    %301 = vmatprep.subr.mxu0 0.0
    %302 = vmatpush2.msra.mxu0 0.0
    %303 = vmatprep.subr.mxu0 0.0
    %304 = vmatpush2.msra.mxu0 0.0
    %305 = vmatprep.subr.mxu0 0.0
    %306 = vmatpush2.msra.mxu0 0.0
    %307 = vmatprep.subr.mxu0 0.0
    %308 = vmatpush2.msra.mxu0 0.0
    %309 = vmatprep.mubr.f32.mxu0 0.0
    %310 = vmatmul.mubr.f32.gmra.mxu0 %v219
    %v311 = vpop.f32.mrf.mxu0
    %v312 = vadd.f32 %v243, %v311
    %v313 = vpop.f32.mrf.mxu0
    %314 = vdwg.mxu0
    %315 = vst [vmem:[#allocation5] sm:$0xff] %v312
    // Predicated region
    $region18: #{fused_linears_forward.1} parent=1 // pred_check
      _
    $region19: #{fused_linears_forward.1} parent=1 // pred_check_branch
      %317 = sbr.rel (0) target = $region21
    $region20: #{fused_linears_forward.1} parent=1 // pred_region
      %s319 = ssub.s32 128, 128
      %320 = vsyncadd [#allocation4], %s319
      %s322 = sshll.u32 [#allocation5], 4
      %s323 = int_to_ptr.vmem [resolvable:$true] %s322
      %325 = dma.vmem_to_hbm [thread:$0]  %s323, 128, %s3, [#allocation4]
    $region21: #{fused_linears_forward.1} parent=1 // pred_fallthru
      _
    // Predicated region
    $region22: #{fused_linears_forward.1} parent=1 // pred_check
      _
    $region23: #{fused_linears_forward.1} parent=1 // pred_check_branch
      %327 = sbr.rel (0) target = $region25
    $region24: #{fused_linears_forward.1} parent=1 // pred_region
      %328 = dma.done [#allocation4], 128
    $region25: #{fused_linears_forward.1} parent=1 // pred_fallthru
      _
    %329 = vsyncpa [#allocation3], 1
    %330 = vsyncpa [#allocation4], 1

</llo_original>
